<compile_context>
chip_gen: v5e
topology: v5e:2x2
jax: 0.10.0
libtpu: 0.0.40
codegen_flags: <defaults>
</compile_context>

<pallas_src>
import jax
import jax.numpy as jnp
from jax.experimental import pallas as pl
from jax.experimental.pallas import tpu as pltpu

LANES = 128
SUBLANES = 8


def _ske_recall_kernel(ign_ref, pred_ref, lab_ref, tp_ref, npos_ref):
    # ign_ref  : SMEM (1,)          int32   scalar-prefetched ignore_index
    # pred_ref : VMEM (TILE_R, 128) float32
    # lab_ref  : VMEM (TILE_R, 128) int32
    # tp_ref   : VMEM (8, 128)      float32 per-core accumulator block
    # npos_ref : VMEM (8, 128)      float32 per-core accumulator block
    @pl.when(pl.program_id(1) == 0)
    def _():
        tp_ref[...] = jnp.zeros_like(tp_ref)
        npos_ref[...] = jnp.zeros_like(npos_ref)

    lab = lab_ref[...]
    mask = (lab != ign_ref[0]).astype(jnp.float32)
    masked_lab = lab.astype(jnp.float32) * mask          # labels * validmask
    prod = pred_ref[...] * masked_lab                    # pred * labels

    # Fold TILE_R rows down to a single (8,128) vreg via cross-vreg VALU adds;
    # the expensive cross-lane reduce is deferred to the (tiny) wrapper sum.
    tp_ref[...] += jnp.sum(prod.reshape(-1, SUBLANES, LANES), axis=0)
    npos_ref[...] += jnp.sum(masked_lab.reshape(-1, SUBLANES, LANES), axis=0)


def ske_recall(pred, labels, ignore_index):
    """pred: [B,C,H,W] float; labels: [1,B,C,H,W] int; returns scalar f32."""
    labels0 = labels[0]                                  # glue: drop leading dim
    assert labels0.shape == pred.shape

    MAX_TILE_R = 2048        # 2048*128*4B = 1 MiB per input block
    NUM_SPLITS = 2           # leading "parallel" axis -> both TCs on v7x

    total = pred.size
    rows = pl.cdiv(total, LANES)
    rows8 = ((rows + SUBLANES - 1) // SUBLANES) * SUBLANES
    tile_r = min(MAX_TILE_R, rows8)                      # multiple of 8
    chunk = NUM_SPLITS * tile_r
    rows_padded = ((rows + chunk - 1) // chunk) * chunk
    pad = rows_padded * LANES - total

    # Zero padding contributes 0 to both tp and N_pos (label 0 -> masked_lab 0).
    pred_flat = jnp.pad(pred.reshape(-1).astype(jnp.float32), (0, pad))
    lab_flat = jnp.pad(labels0.reshape(-1).astype(jnp.int32), (0, pad))
    pred2d = pred_flat.reshape(rows_padded, LANES)
    lab2d = lab_flat.reshape(rows_padded, LANES)

    inner = rows_padded // chunk
    grid = (NUM_SPLITS, inner)

    ign = jnp.asarray([ignore_index], dtype=jnp.int32)

    tp_part, npos_part = pl.pallas_call(
        _ske_recall_kernel,
        out_shape=(
            jax.ShapeDtypeStruct((NUM_SPLITS * SUBLANES, LANES), jnp.float32),
            jax.ShapeDtypeStruct((NUM_SPLITS * SUBLANES, LANES), jnp.float32),
        ),
        grid_spec=pltpu.PrefetchScalarGridSpec(
            num_scalar_prefetch=1,
            grid=grid,
            in_specs=[
                pl.BlockSpec((tile_r, LANES),
                             lambda c, i, ign_ref: (c * inner + i, 0)),
                pl.BlockSpec((tile_r, LANES),
                             lambda c, i, ign_ref: (c * inner + i, 0)),
            ],
            out_specs=(
                pl.BlockSpec((SUBLANES, LANES), lambda c, i, ign_ref: (c, 0)),
                pl.BlockSpec((SUBLANES, LANES), lambda c, i, ign_ref: (c, 0)),
            ),
        ),
        compiler_params=pltpu.CompilerParams(
            dimension_semantics=("parallel", "arbitrary"),
        ),
    )(ign, pred2d, lab2d)

    tp = jnp.sum(tp_part)
    npos = jnp.sum(npos_part)
    # TODO(synk): no guard for N_pos == 0 (matches PyTorch: returns inf/nan);
    #             f32 accumulation of integer label sums can drift above ~2^24.
    return (tp / npos).astype(jnp.float32)


if __name__ == "__main__":
    key = jax.random.PRNGKey(0)
    kp, kl = jax.random.split(key)

    B, C, H, W = 2, 4, 16, 16
    ignore_index = -1

    pred = jax.random.uniform(kp, (B, C, H, W), dtype=jnp.float32)
    # labels in {-1, 0, 1}: -1 positions are ignored, 1 positions are positive
    labels_body = jax.random.randint(kl, (B, C, H, W), minval=-1, maxval=2,
                                     dtype=jnp.int32)
    labels = labels_body[None, ...]                      # [1, B, C, H, W]

    loss = ske_recall(pred, labels, ignore_index)
    jax.block_until_ready(loss)

    # reference check in plain JAX
    lab0 = labels[0]
    mask = (lab0 != ignore_index)
    ml = (lab0 * mask).astype(jnp.float32)
    ref = jnp.sum(pred * ml) / jnp.sum(ml)
    assert jnp.allclose(loss, ref, rtol=1e-5, atol=1e-6), (loss, ref)

    print("KERNEL_OK")
</pallas_src>

<mosaic_0001>
module attributes {stable_mosaic.version = 11 : i64} {
  func.func @_ske_recall_kernel(%arg0: i32, %arg1: i32, %arg2: memref<1xi32, #tpu.memory_space<smem>>, %arg3: memref<16x128xf32, #tpu.memory_space<vmem>>, %arg4: memref<16x128xi32, #tpu.memory_space<vmem>>, %arg5: memref<8x128xf32, #tpu.memory_space<vmem>>, %arg6: memref<8x128xf32, #tpu.memory_space<vmem>>) attributes {dimension_semantics = [#tpu.dimension_semantics<parallel>, #tpu.dimension_semantics<arbitrary>], iteration_bounds = array<i64: 2, 1>, scalar_prefetch = 1 : i64, scratch_operands = 0 : i64, tpu.core_type = #tpu.core_type<tc>, window_params = [{transform_indices = @transform_0, window_bounds = array<i64: 16, 128>}, {transform_indices = @transform_1, window_bounds = array<i64: 16, 128>}, {transform_indices = @transform_2, window_bounds = array<i64: 8, 128>}, {transform_indices = @transform_3, window_bounds = array<i64: 8, 128>}]} {
    %c0_i32 = arith.constant 0 : i32
    %0 = arith.cmpi eq, %arg1, %c0_i32 : i32
    %1 = arith.extui %0 : i1 to i32
    %c0_i32_0 = arith.constant 0 : i32
    %2 = arith.cmpi ne, %1, %c0_i32_0 : i32
    scf.if %2 {
      %cst_14 = arith.constant 0.000000e+00 : f32
      %23 = vector.broadcast %cst_14 : f32 to vector<8x128xf32>
      %c0_15 = arith.constant 0 : index
      %c0_16 = arith.constant 0 : index
      %24 = vector.load %arg5[%c0_15, %c0_16] : memref<8x128xf32, #tpu.memory_space<vmem>>, vector<8x128xf32>
      tpu.vector_store %arg5[%c0_15, %c0_16], %23 {strides = array<i32>} : memref<8x128xf32, #tpu.memory_space<vmem>>, vector<8x128xf32>,
      %cst_17 = arith.constant 0.000000e+00 : f32
      %25 = vector.broadcast %cst_17 : f32 to vector<8x128xf32>
      %c0_18 = arith.constant 0 : index
      %c0_19 = arith.constant 0 : index
      %26 = vector.load %arg6[%c0_18, %c0_19] : memref<8x128xf32, #tpu.memory_space<vmem>>, vector<8x128xf32>
      tpu.vector_store %arg6[%c0_18, %c0_19], %25 {strides = array<i32>} : memref<8x128xf32, #tpu.memory_space<vmem>>, vector<8x128xf32>,
    } else {
    }
    %c0 = arith.constant 0 : index
    %c0_1 = arith.constant 0 : index
    %3 = vector.load %arg4[%c0, %c0_1] : memref<16x128xi32, #tpu.memory_space<vmem>>, vector<16x128xi32>
    %c0_2 = arith.constant 0 : index
    %4 = memref.load %arg2[%c0_2] : memref<1xi32, #tpu.memory_space<smem>>
    %5 = vector.broadcast %4 : i32 to vector<16x128xi32>
    %6 = arith.cmpi ne, %3, %5 : vector<16x128xi32>
    %7 = arith.extui %6 : vector<16x128xi1> to vector<16x128xi32>
    %8 = arith.sitofp %7 : vector<16x128xi32> to vector<16x128xf32>
    %9 = arith.sitofp %3 : vector<16x128xi32> to vector<16x128xf32>
    %10 = arith.mulf %9, %8 : vector<16x128xf32>
    %c0_3 = arith.constant 0 : index
    %c0_4 = arith.constant 0 : index
    %11 = vector.load %arg3[%c0_3, %c0_4] : memref<16x128xf32, #tpu.memory_space<vmem>>, vector<16x128xf32>
    %12 = arith.mulf %11, %10 : vector<16x128xf32>
    %c0_5 = arith.constant 0 : index
    %c0_6 = arith.constant 0 : index
    %13 = vector.load %arg5[%c0_5, %c0_6] : memref<8x128xf32, #tpu.memory_space<vmem>>, vector<8x128xf32>
    %14 = vector.shape_cast %12 : vector<16x128xf32> to vector<2x8x128xf32>
    %cst = arith.constant dense<0.000000e+00> : vector<8x128xf32>
    %15 = vector.multi_reduction <add>, %14, %cst [0] : vector<2x8x128xf32> to vector<8x128xf32>
    %16 = arith.addf %13, %15 : vector<8x128xf32>
    %c0_7 = arith.constant 0 : index
    %c0_8 = arith.constant 0 : index
    %17 = vector.load %arg5[%c0_7, %c0_8] : memref<8x128xf32, #tpu.memory_space<vmem>>, vector<8x128xf32>
    tpu.vector_store %arg5[%c0_7, %c0_8], %16 {strides = array<i32>} : memref<8x128xf32, #tpu.memory_space<vmem>>, vector<8x128xf32>,
    %c0_9 = arith.constant 0 : index
    %c0_10 = arith.constant 0 : index
    %18 = vector.load %arg6[%c0_9, %c0_10] : memref<8x128xf32, #tpu.memory_space<vmem>>, vector<8x128xf32>
    %19 = vector.shape_cast %10 : vector<16x128xf32> to vector<2x8x128xf32>
    %cst_11 = arith.constant dense<0.000000e+00> : vector<8x128xf32>
    %20 = vector.multi_reduction <add>, %19, %cst_11 [0] : vector<2x8x128xf32> to vector<8x128xf32>
    %21 = arith.addf %18, %20 : vector<8x128xf32>
    %c0_12 = arith.constant 0 : index
    %c0_13 = arith.constant 0 : index
    %22 = vector.load %arg6[%c0_12, %c0_13] : memref<8x128xf32, #tpu.memory_space<vmem>>, vector<8x128xf32>
    tpu.vector_store %arg6[%c0_12, %c0_13], %21 {strides = array<i32>} : memref<8x128xf32, #tpu.memory_space<vmem>>, vector<8x128xf32>,
    return
  }
  func.func @transform_0(%arg0: i32, %arg1: i32, %arg2: memref<1xi32, #tpu.memory_space<smem>>) -> (i32, i32) {
    %c1_i32 = arith.constant 1 : i32
    %0 = arith.muli %arg0, %c1_i32 : i32
    %1 = arith.addi %0, %arg1 : i32
    %c0_i32 = arith.constant 0 : i32
    %c0_i32_0 = arith.constant 0 : i32
    return %1, %c0_i32 : i32, i32
  }
  func.func @transform_1(%arg0: i32, %arg1: i32, %arg2: memref<1xi32, #tpu.memory_space<smem>>) -> (i32, i32) {
    %c1_i32 = arith.constant 1 : i32
    %0 = arith.muli %arg0, %c1_i32 : i32
    %1 = arith.addi %0, %arg1 : i32
    %c0_i32 = arith.constant 0 : i32
    %c0_i32_0 = arith.constant 0 : i32
    return %1, %c0_i32 : i32, i32
  }
  func.func @transform_2(%arg0: i32, %arg1: i32, %arg2: memref<1xi32, #tpu.memory_space<smem>>) -> (i32, i32) {
    %c0_i32 = arith.constant 0 : i32
    %c0_i32_0 = arith.constant 0 : i32
    return %arg0, %c0_i32 : i32, i32
  }
  func.func @transform_3(%arg0: i32, %arg1: i32, %arg2: memref<1xi32, #tpu.memory_space<smem>>) -> (i32, i32) {
    %c0_i32 = arith.constant 0 : i32
    %c0_i32_0 = arith.constant 0 : i32
    return %arg0, %c0_i32 : i32, i32
  }
}

</mosaic_0001>

<llo_original>
// kernel: tpu_custom_call.1
$region0: #{tpu_custom_call.1}
  #allocation0 [shape = 'u32[]', space=smem, size = 0x4, offset = 0x4, fixed_abs, tag = 'smem constant byte address 0x4 - core index']
  #allocation1 [shape = 'u32[72,128]{1,0:T(1,128)}', space=vmem, size = 0x9000, scoped, tag = 'internal scratch']
  #allocation2 [shape = 's32[1]{0}', space=sflag, size = 0x4, scoped, tag = 'scoped memory for tpu_custom_call.1']
  #allocation3 [shape = 's32[1]{0:T(128)S(6)}', space=smem, size = 0x200, scoped, tag = 'prefetched SMEM operand 0']
  %s0 = inlined_call_operand.<no memory space> [shape: s32[1], index: 0, kind: input, shape index: {}]
  %s1 = inlined_call_operand.hbm [shape: f32[32,128], index: 1, kind: input, shape index: {}]
  %s2 = inlined_call_operand.hbm [shape: s32[32,128], index: 2, kind: input, shape index: {}]
  %s3 = inlined_call_operand.hbm [shape: f32[16,128], index: 3, kind: output, shape index: {0}]
  %s4 = inlined_call_operand.hbm [shape: f32[16,128], index: 4, kind: output, shape index: {1}]
  %5 = xla_tuple %s3, %s4
  %s6 = sld [smem:[#allocation0]]
  $region61: #{tpu_custom_call.1} parent=0
    _
  %s8 = ssub.s32 1, %s6
  %s9 = scalar_select 0, %s8, %s6
  %10 = sst [smem:[#allocation3]] %s0
  $region1: #{tpu_custom_call.1} parent=0
    #allocation4 [shape = 'u8[16384]{0}', space=vmem, size = 0x4000, scoped, tag = 'input window, operand 1']
    #allocation5 [shape = 's32[2]{0}', space=sflag, size = 0x8, scoped, tag = 'scoped memory for tpu_custom_call.1']
    #allocation6 [shape = 's32[2]{0}', space=sflag, size = 0x8, scoped, tag = 'scoped memory for tpu_custom_call.1']
    #allocation7 [shape = 'u8[16384]{0}', space=vmem, size = 0x4000, scoped, tag = 'input window, operand 2']
    #allocation8 [shape = 's32[2]{0}', space=sflag, size = 0x8, scoped, tag = 'scoped memory for tpu_custom_call.1']
    #allocation9 [shape = 'u8[8192]{0}', space=vmem, size = 0x2000, scoped, tag = 'output window, operand 0']
    #allocation10 [shape = 'u8[8192]{0}', space=vmem, size = 0x2000, scoped, tag = 'output window, operand 1']
    #allocation11 [shape = 's32[2]{0}', space=sflag, size = 0x8, scoped, tag = 'scoped memory for tpu_custom_call.1']
    %11 = vsyncpa [#allocation5], 0
    %s12 = scalar_lea.sflag [#allocation5], 1
    %13 = vsyncpa %s12, 0
    %14 = vsyncpa [#allocation8], 0
    %s15 = scalar_lea.sflag [#allocation8], 1
    %16 = vsyncpa %s15, 0
    %17 = vsyncpa [#allocation6], 0
    %s18 = scalar_lea.sflag [#allocation6], 1
    %19 = vsyncpa %s18, 0
    %20 = vsyncpa [#allocation11], 0
    %s21 = scalar_lea.sflag [#allocation11], 1
    %22 = vsyncpa %s21, 0
    loop: start=0, step=1, limit=4
    $region2: #{tpu_custom_call.1} parent=1 // loop_pre_header
      _
    $region3: #{tpu_custom_call.1} parent=1 // loop_header
      %s24 = sphi 0, %s28
      %p25 = scmp.ge.s32.totalorder %s24, 4
      %s31 = sphi 0, %s43
      %s32 = sphi 0, %s39
      %s33 = sphi 0, %s31
      %s34 = sphi 0, %s32
      %s35 = sphi 0, %s33
      %s36 = sphi 0, %s34
      %s48 = sphi 0, %s50
      %s51 = sphi 0, %s48
      %s52 = sphi 0, %s51
      %s68 = sphi 0, %s52
      %s76 = sphi 0, %s78
      %s79 = sphi 0, %s76
      %s80 = sphi 0, %s79
      %s96 = sphi 0, %s80
      %s102 = sphi 0, %s104
      %s105 = sphi 0, %s102
      %s106 = sphi 0, %s105
      %s122 = sphi 0, %s106
      %s128 = sphi 0, %s130
      %s131 = sphi 0, %s128
      %s132 = sphi 0, %s131
      %s148 = sphi 0, %s132
    $region4: #{tpu_custom_call.1} parent=1 // loop_header_branch
      %27 = sbr.rel (%p25) target = $region8
    $region5: #{tpu_custom_call.1} parent=1 // loop_body
      %s29 = ssub.s32 %s24, 1
      %s30 = ssub.s32 %s24, 2
      %s37 = sadd.s32 1, %s32
      %p38 = scmp.ge.s32.totalorder %s37, 1
      %s39 = scalar_select %p38, 0, %s37
      %s40 = sadd.s32 1, %s31
      %s41 = scalar_select %p38, %s40, %s31
      %p42 = scmp.ge.s32.totalorder %s41, 2
      %s43 = scalar_select %p42, 0, %s41
      %s44 = sadd.s32 %s31, %s32
      %s45 = sadd.s32 %s43, %s39
      %s46 = ssub.s32 %s44, %s45
      %p47 = scmp.eq.s32.totalorder %s46, 0
      %s49 = sadd.s32 %s48, 1
      %s50 = scalar_select %p47, %s48, %s49
      %p53 = pneg %p47
      %p54 = scmp.eq.s32.totalorder %s24, 1
      %p55 = por %p53, %p54
      %p56 = scmp.ne.s32.totalorder %s48, %s51
      %p57 = scmp.eq.s32.totalorder %s24, 0
      %p58 = por %p56, %p57
      %p59 = scmp.ne.s32.totalorder %s48, %s51
      %p60 = scmp.eq.s32.totalorder %s29, 1
      %p61 = por %p59, %p60
      %p62 = scmp.ne.s32.totalorder %s51, %s52
      %p63 = scmp.eq.s32.totalorder %s29, 0
      %p64 = por %p62, %p63
      %p65 = scmp.ne.s32.totalorder %s51, %s52
      %p66 = scmp.eq.s32.totalorder %s30, 1
      %p67 = por %p65, %p66
      %p69 = scmp.ne.s32.totalorder %s52, %s68
      %p70 = scmp.eq.s32.totalorder %s30, 0
      %p71 = por %p69, %p70
      %s72 = sadd.s32 %s31, %s32
      %s73 = sadd.s32 %s43, %s39
      %s74 = ssub.s32 %s72, %s73
      %p75 = scmp.eq.s32.totalorder %s74, 0
      %s77 = sadd.s32 %s76, 1
      %s78 = scalar_select %p75, %s76, %s77
      %p81 = pneg %p75
      %p82 = scmp.eq.s32.totalorder %s24, 1
      %p83 = por %p81, %p82
      %p84 = scmp.ne.s32.totalorder %s76, %s79
      %p85 = scmp.eq.s32.totalorder %s24, 0
      %p86 = por %p84, %p85
      %p87 = scmp.ne.s32.totalorder %s76, %s79
      %p88 = scmp.eq.s32.totalorder %s29, 1
      %p89 = por %p87, %p88
      %p90 = scmp.ne.s32.totalorder %s79, %s80
      %p91 = scmp.eq.s32.totalorder %s29, 0
      %p92 = por %p90, %p91
      %p93 = scmp.ne.s32.totalorder %s79, %s80
      %p94 = scmp.eq.s32.totalorder %s30, 1
      %p95 = por %p93, %p94
      %p97 = scmp.ne.s32.totalorder %s80, %s96
      %p98 = scmp.eq.s32.totalorder %s30, 0
      %p99 = por %p97, %p98
      %s100 = ssub.s32 %s31, %s43
      %p101 = scmp.eq.s32.totalorder %s100, 0
      %s103 = sadd.s32 %s102, 1
      %s104 = scalar_select %p101, %s102, %s103
      %p107 = pneg %p101
      %p108 = scmp.eq.s32.totalorder %s24, 1
      %p109 = por %p107, %p108
      %p110 = scmp.ne.s32.totalorder %s102, %s105
      %p111 = scmp.eq.s32.totalorder %s24, 0
      %p112 = por %p110, %p111
      %p113 = scmp.ne.s32.totalorder %s102, %s105
      %p114 = scmp.eq.s32.totalorder %s29, 1
      %p115 = por %p113, %p114
      %p116 = scmp.ne.s32.totalorder %s105, %s106
      %p117 = scmp.eq.s32.totalorder %s29, 0
      %p118 = por %p116, %p117
      %p119 = scmp.ne.s32.totalorder %s105, %s106
      %p120 = scmp.eq.s32.totalorder %s30, 1
      %p121 = por %p119, %p120
      %p123 = scmp.ne.s32.totalorder %s106, %s122
      %p124 = scmp.eq.s32.totalorder %s30, 0
      %p125 = por %p123, %p124
      %s126 = ssub.s32 %s31, %s43
      %p127 = scmp.eq.s32.totalorder %s126, 0
      %s129 = sadd.s32 %s128, 1
      %s130 = scalar_select %p127, %s128, %s129
      %p133 = pneg %p127
      %p134 = scmp.eq.s32.totalorder %s24, 1
      %p135 = por %p133, %p134
      %p136 = scmp.ne.s32.totalorder %s128, %s131
      %p137 = scmp.eq.s32.totalorder %s24, 0
      %p138 = por %p136, %p137
      %p139 = scmp.ne.s32.totalorder %s128, %s131
      %p140 = scmp.eq.s32.totalorder %s29, 1
      %p141 = por %p139, %p140
      %p142 = scmp.ne.s32.totalorder %s131, %s132
      %p143 = scmp.eq.s32.totalorder %s29, 0
      %p144 = por %p142, %p143
      %p145 = scmp.ne.s32.totalorder %s131, %s132
      %p146 = scmp.eq.s32.totalorder %s30, 1
      %p147 = por %p145, %p146
      %p149 = scmp.ne.s32.totalorder %s132, %s148
      %p150 = scmp.eq.s32.totalorder %s30, 0
      %p151 = por %p149, %p150
      %p152 = scmp.le.s32.totalorder 1, %s24
      %p153 = scmp.lt.s32.totalorder %s24, 3
      %p154 = pnand %p152, %p153
      %p155 = pneg %p154
      // Predicated region
      $region9: #{tpu_custom_call.1} parent=5 // pred_check
        _
      $region10: #{tpu_custom_call.1} parent=5 // pred_check_branch
        %157 = sbr.rel (%p154) target = $region12
      $region11: #{tpu_custom_call.1} parent=5 // pred_region
        %s158 = ssub.s32 %s24, 1
      $region12: #{tpu_custom_call.1} parent=5 // pred_fallthru
        _
      %p159 = scmp.lt.s32.totalorder %s24, 2
      // Predicated region
      $region13: #{tpu_custom_call.1} parent=5 // pred_check
        %p160 = pneg %p159
      $region14: #{tpu_custom_call.1} parent=5 // pred_check_branch
        %162 = sbr.rel (%p160) target = $region16
      $region15: #{tpu_custom_call.1} parent=5 // pred_region
        // Predicated region
        $region17: #{tpu_custom_call.1} parent=15 // pred_check
          %p163 = pneg %p58
        $region18: #{tpu_custom_call.1} parent=15 // pred_check_branch
          %165 = sbr.rel (%p163) target = $region20
        $region19: #{tpu_custom_call.1} parent=15 // pred_region
          %s166 = sand.u32 %s48, 1
          %s167 = scalar_lea.sflag [#allocation5], %s166
          %s168 = sand.u32 %s48, 1
          %s169 = smul.addr %s168, 16
          %s170 = scalar_lea.vmem [#allocation4], %s169
          %s171 = sadd.s32 %s31, %s32
          %s172 = smul.u32 2, %s171
          %174 = vsyncadd %s167, 0
          %s175 = smul.addr %s172, 8
          %s176 = scalar_lea.hbm %s1, %s175
          %s177 = sshll.u32 %s176, 4
          %s178 = int_to_ptr.hbm [resolvable:$true] %s177
          %s179 = sshll.u32 %s170, 4
          %s180 = int_to_ptr.vmem [resolvable:$true] %s179
          %185 = dma.hbm_to_vmem [thread:$0]  %s178, 256, %s180, %s167, 128, 128, 8
        $region20: #{tpu_custom_call.1} parent=15 // pred_fallthru
          _
        // Predicated region
        $region21: #{tpu_custom_call.1} parent=15 // pred_check
          %p186 = pneg %p86
        $region22: #{tpu_custom_call.1} parent=15 // pred_check_branch
          %188 = sbr.rel (%p186) target = $region24
        $region23: #{tpu_custom_call.1} parent=15 // pred_region
          %s189 = sand.u32 %s76, 1
          %s190 = scalar_lea.sflag [#allocation8], %s189
          %s191 = sand.u32 %s76, 1
          %s192 = smul.addr %s191, 16
          %s193 = scalar_lea.vmem [#allocation7], %s192
          %s194 = sadd.s32 %s31, %s32
          %s195 = smul.u32 2, %s194
          %197 = vsyncadd %s190, 0
          %s198 = smul.addr %s195, 8
          %s199 = scalar_lea.hbm %s2, %s198
          %s200 = sshll.u32 %s199, 4
          %s201 = int_to_ptr.hbm [resolvable:$true] %s200
          %s202 = sshll.u32 %s193, 4
          %s203 = int_to_ptr.vmem [resolvable:$true] %s202
          %208 = dma.hbm_to_vmem [thread:$0]  %s201, 256, %s203, %s190, 128, 128, 8
        $region24: #{tpu_custom_call.1} parent=15 // pred_fallthru
          _
      $region16: #{tpu_custom_call.1} parent=5 // pred_fallthru
        _
      %p209 = scmp.le.s32.totalorder 1, %s24
      %p210 = scmp.lt.s32.totalorder %s24, 3
      %p211 = pnand %p209, %p210
      %p212 = pneg %p211
      // Predicated region
      $region25: #{tpu_custom_call.1} parent=5 // pred_check
        _
      $region26: #{tpu_custom_call.1} parent=5 // pred_check_branch
        %214 = sbr.rel (%p211) target = $region28
      $region27: #{tpu_custom_call.1} parent=5 // pred_region
        %s215 = ssub.s32 %s24, 1
        %s216 = sand.u32 %s51, 1
        %s217 = scalar_lea.sflag [#allocation5], %s216
        %s218 = sand.u32 %s51, 1
        %s219 = smul.addr %s218, 16
        %s220 = scalar_lea.vmem [#allocation4], %s219
        // Predicated region
        $region29: #{tpu_custom_call.1} parent=27 // pred_check
          %p221 = pneg %p64
        $region30: #{tpu_custom_call.1} parent=27 // pred_check_branch
          %223 = sbr.rel (%p221) target = $region32
        $region31: #{tpu_custom_call.1} parent=27 // pred_region
          %225 = dma.done %s217, 256
        $region32: #{tpu_custom_call.1} parent=27 // pred_fallthru
          _
        %s226 = sand.u32 %s79, 1
        %s227 = scalar_lea.sflag [#allocation8], %s226
        %s228 = sand.u32 %s79, 1
        %s229 = smul.addr %s228, 16
        %s230 = scalar_lea.vmem [#allocation7], %s229
        // Predicated region
        $region33: #{tpu_custom_call.1} parent=27 // pred_check
          %p231 = pneg %p92
        $region34: #{tpu_custom_call.1} parent=27 // pred_check_branch
          %233 = sbr.rel (%p231) target = $region36
        $region35: #{tpu_custom_call.1} parent=27 // pred_region
          %235 = dma.done %s227, 256
        $region36: #{tpu_custom_call.1} parent=27 // pred_fallthru
          _
        %s236 = sand.u32 %s51, 1
        %s237 = scalar_lea.sflag [#allocation5], %s236
        %s238 = sand.u32 %s51, 1
        %s239 = smul.addr %s238, 16
        %s240 = scalar_lea.vmem [#allocation4], %s239
        %p241 = pneg %p64
        %p242 = pneg %p61
        %s243 = sand.u32 %s79, 1
        %s244 = scalar_lea.sflag [#allocation8], %s243
        %s245 = sand.u32 %s79, 1
        %s246 = smul.addr %s245, 16
        %s247 = scalar_lea.vmem [#allocation7], %s246
        %p248 = pneg %p92
        %p249 = pneg %p89
        %p250 = pneg %p118
        %p251 = pneg %p115
        %s252 = sand.u32 %s105, 1
        %s253 = scalar_lea.sflag [#allocation6], %s252
        %s254 = sand.u32 %s105, 1
        %s255 = smul.addr %s254, 8
        %s256 = scalar_lea.vmem [#allocation9], %s255
        %p257 = pneg %p144
        %p258 = pneg %p141
        %s259 = sand.u32 %s131, 1
        %s260 = scalar_lea.sflag [#allocation11], %s259
        %s261 = sand.u32 %s131, 1
        %s262 = smul.addr %s261, 8
        %s263 = scalar_lea.vmem [#allocation10], %s262
        %s264 = sadd.s32 %s33, %s34
        %s265 = smul.u32 2, %s264
        %s266 = sadd.s32 %s33, %s34
        %s267 = smul.u32 2, %s266
        %p268 = scmp.eq.s32.totalorder %s34, 0
        // Predicated region
        $region37: #{tpu_custom_call.1} parent=27 // pred_check
          %p269 = pneg %p268
        $region38: #{tpu_custom_call.1} parent=27 // pred_check_branch
          %271 = sbr.rel (%p269) target = $region40
        $region39: #{tpu_custom_call.1} parent=27 // pred_region
          %272 = vst [vmem:[%s256] sm:$0xff] 0.0
          %273 = vst [vmem:[%s263] sm:$0xff] 0.0
        $region40: #{tpu_custom_call.1} parent=27 // pred_fallthru
          _
        %v274 = vld [vmem:[%s230] sm:$0xff]
        %v275 = vld [vmem:[%s230 + $0x8] sm:$0xff]
        %s276 = sld [smem:[#allocation3]]
        %v277 = vstv %s276
        %vm278 = vcmp.ne.s32.totalorder %v274, %v277
        %vm279 = vcmp.ne.s32.totalorder %v275, %v277
        %v280 = vsel %vm278, 1, 0
        %v281 = vsel %vm279, 1, 0
        %v282 = vcvt.s32.f32 %v280
        %v283 = vcvt.s32.f32 %v281
        %v284 = vcvt.s32.f32 %v274
        %v285 = vcvt.s32.f32 %v275
        %v286 = vmul.f32 %v284, %v282
        %v287 = vmul.f32 %v285, %v283
        %v288 = vld [vmem:[%s220] sm:$0xff]
        %v289 = vld [vmem:[%s220 + $0x8] sm:$0xff]
        %v290 = vmul.f32 %v288, %v286
        %v291 = vmul.f32 %v289, %v287
        %v292 = vld [vmem:[%s256] sm:$0xff]
        %v293 = vadd.f32 %v290, %v291
        %v294 = vadd.f32 %v292, %v293
        %295 = vst [vmem:[%s256] sm:$0xff] %v294
        %v296 = vld [vmem:[%s263] sm:$0xff]
        %v297 = vadd.f32 %v286, %v287
        %v298 = vadd.f32 %v296, %v297
        %299 = vst [vmem:[%s263] sm:$0xff] %v298
        %s300 = sand.u32 %s105, 1
        %s301 = scalar_lea.sflag [#allocation6], %s300
        %s302 = sand.u32 %s105, 1
        %s303 = smul.addr %s302, 8
        %s304 = scalar_lea.vmem [#allocation9], %s303
        %s305 = sand.u32 %s131, 1
        %s306 = scalar_lea.sflag [#allocation11], %s305
        %s307 = sand.u32 %s131, 1
        %s308 = smul.addr %s307, 8
        %s309 = scalar_lea.vmem [#allocation10], %s308
        // Predicated region
        $region41: #{tpu_custom_call.1} parent=27 // pred_check
          %p310 = pneg %p115
        $region42: #{tpu_custom_call.1} parent=27 // pred_check_branch
          %312 = sbr.rel (%p310) target = $region44
        $region43: #{tpu_custom_call.1} parent=27 // pred_region
          %314 = vsyncadd %s301, 0
          %s315 = smul.addr %s33, 8
          %s316 = scalar_lea.hbm %s3, %s315
          %s318 = sshll.u32 %s304, 4
          %s319 = int_to_ptr.vmem [resolvable:$true] %s318
          %s320 = sshll.u32 %s316, 4
          %s321 = int_to_ptr.hbm [resolvable:$true] %s320
          %323 = dma.vmem_to_hbm [thread:$0]  %s319, 128, %s321, %s301
        $region44: #{tpu_custom_call.1} parent=27 // pred_fallthru
          _
        // Predicated region
        $region45: #{tpu_custom_call.1} parent=27 // pred_check
          %p324 = pneg %p141
        $region46: #{tpu_custom_call.1} parent=27 // pred_check_branch
          %326 = sbr.rel (%p324) target = $region48
        $region47: #{tpu_custom_call.1} parent=27 // pred_region
          %328 = vsyncadd %s306, 0
          %s329 = smul.addr %s33, 8
          %s330 = scalar_lea.hbm %s4, %s329
          %s332 = sshll.u32 %s309, 4
          %s333 = int_to_ptr.vmem [resolvable:$true] %s332
          %s334 = sshll.u32 %s330, 4
          %s335 = int_to_ptr.hbm [resolvable:$true] %s334
          %337 = dma.vmem_to_hbm [thread:$0]  %s333, 128, %s335, %s306
        $region48: #{tpu_custom_call.1} parent=27 // pred_fallthru
          _
      $region28: #{tpu_custom_call.1} parent=5 // pred_fallthru
        _
      %p338 = scmp.le.s32.totalorder 2, %s24
      // Predicated region
      $region49: #{tpu_custom_call.1} parent=5 // pred_check
        %p339 = pneg %p338
      $region50: #{tpu_custom_call.1} parent=5 // pred_check_branch
        %341 = sbr.rel (%p339) target = $region52
      $region51: #{tpu_custom_call.1} parent=5 // pred_region
        %s342 = ssub.s32 %s24, 2
        // Predicated region
        $region53: #{tpu_custom_call.1} parent=51 // pred_check
          %p343 = pneg %p121
        $region54: #{tpu_custom_call.1} parent=51 // pred_check_branch
          %345 = sbr.rel (%p343) target = $region56
        $region55: #{tpu_custom_call.1} parent=51 // pred_region
          %s346 = sand.u32 %s106, 1
          %s347 = scalar_lea.sflag [#allocation6], %s346
          %s348 = sand.u32 %s106, 1
          %s349 = smul.addr %s348, 8
          %s350 = scalar_lea.vmem [#allocation9], %s349
          %352 = dma.done %s347, 128
        $region56: #{tpu_custom_call.1} parent=51 // pred_fallthru
          _
        // Predicated region
        $region57: #{tpu_custom_call.1} parent=51 // pred_check
          %p353 = pneg %p147
        $region58: #{tpu_custom_call.1} parent=51 // pred_check_branch
          %355 = sbr.rel (%p353) target = $region60
        $region59: #{tpu_custom_call.1} parent=51 // pred_region
          %s356 = sand.u32 %s132, 1
          %s357 = scalar_lea.sflag [#allocation11], %s356
          %s358 = sand.u32 %s132, 1
          %s359 = smul.addr %s358, 8
          %s360 = scalar_lea.vmem [#allocation10], %s359
          %362 = dma.done %s357, 128
        $region60: #{tpu_custom_call.1} parent=51 // pred_fallthru
          _
      $region52: #{tpu_custom_call.1} parent=5 // pred_fallthru
        _
    $region6: #{tpu_custom_call.1} parent=1 // loop_footer
      %s28 = sadd.s32 1, %s24
    $region7: #{tpu_custom_call.1} parent=1 // loop_footer_branch
      %23 = sbr.rel target = $region3
    $region8: #{tpu_custom_call.1} parent=1 // loop_exit
      _
    %363 = vsyncpa [#allocation5], 1
    %s364 = scalar_lea.sflag [#allocation5], 1
    %365 = vsyncpa %s364, 1
    %366 = vsyncpa [#allocation8], 1
    %s367 = scalar_lea.sflag [#allocation8], 1
    %368 = vsyncpa %s367, 1
    %369 = vsyncpa [#allocation6], 1
    %s370 = scalar_lea.sflag [#allocation6], 1
    %371 = vsyncpa %s370, 1
    %372 = vsyncpa [#allocation11], 1
    %s373 = scalar_lea.sflag [#allocation11], 1
    %374 = vsyncpa %s373, 1

</llo_original>
